<compile_context>
chip_gen: v7x
topology: tpu7x:2x2x1
jax: 0.10.0
libtpu: 0.0.40
codegen_flags: <defaults>
</compile_context>

<pallas_src>
import functools

import jax
import jax.numpy as jnp
from jax.experimental import pallas as pl
from jax.experimental.pallas import tpu as pltpu


def _critic_kernel(num_hidden, ol_ref, act_ref, w0_ol_ref, w0_act_ref, b0_ref, *rest):
    """rest = (W1, b1, ..., W_{H-1}, b_{H-1}, W_last^T (1,U), b_last (1,) SMEM, out_ref)."""
    out_ref = rest[-1]
    b_last_ref = rest[-2]        # SMEM scalar
    w_last_ref = rest[-3]        # (1, U), pre-transposed in the wrapper
    hidden = rest[:-3]

    ol = ol_ref[...]             # (TB, obs_dim + latent_dim), native dtype
    act = act_ref[...]           # (TB, 1) int32

    # ---- Layer 0: single fused matmul over the stacked [W0_obs; W0_lat] slab. ----
    w0_ol = w0_ol_ref[...]
    h = jnp.dot(ol.astype(w0_ol.dtype), w0_ol, preferred_element_type=jnp.float32)

    # one_hot(action) @ W0_act == row-select of W0_act. action_dim is tiny (4), so an
    # unrolled VPU select-accumulate is cheaper than a dense matmul.
    # TODO(synk): for action_dim >~ 8, fold a broadcasted_iota one-hot into the layer-0
    # MXU matmul instead of this VPU loop.
    w0_act = w0_act_ref[...]                    # (action_dim, U), kept f32
    for a in range(w0_act.shape[0]):
        h = h + jnp.where(act == a, 1.0, 0.0) * w0_act[a:a + 1, :]
    h = jnp.maximum(h + b0_ref[...], 0.0)
    # TODO(synk): Dropout(p=0.2) intentionally omitted -- inference-mode forward only.

    # ---- Hidden layers 1 .. num_hidden-1 (Linear + ReLU). MXU operands match the
    # stored weight dtype (bf16 when enabled); accumulation and elementwise stay f32. ----
    for i in range(num_hidden - 1):
        w = hidden[2 * i][...]
        b = hidden[2 * i + 1][...]
        h = jnp.maximum(
            jnp.dot(h.astype(w.dtype), w, preferred_element_type=jnp.float32) + b, 0.0)

    # ---- Output: Linear(U, 1) + sigmoid, written lane-dense as (1, TB). ----
    w_last = w_last_ref[...]                    # (1, U)
    z = jax.lax.dot_general(w_last, h.astype(w_last.dtype), (((1,), (1,)), ((), ())),
                            preferred_element_type=jnp.float32) + b_last_ref[0]
    out_ref[...] = jax.nn.sigmoid(z).astype(out_ref.dtype)


def init_critic_params(key, obs_dim, action_dim, latent_dim, num_hidden, num_units):
    """Deterministic synthetic parameters. Linear layers stored as (in, out) + (out,)."""
    in_dim = obs_dim + action_dim + latent_dim
    dims = [in_dim] + [num_units] * num_hidden + [1]
    params = []
    for i in range(len(dims) - 1):
        key, kw, kb = jax.random.split(key, 3)
        fan_in = dims[i]
        w = jax.random.normal(kw, (dims[i], dims[i + 1]), jnp.float32) * (1.0 / jnp.sqrt(fan_in))
        b = jax.random.normal(kb, (dims[i + 1],), jnp.float32) * 0.01
        params.append((w, b))
    return params


def prepare_critic_params(params, obs_dim, action_dim, latent_dim,
                          weight_dtype=jnp.float32):
    """One-time param prep (outside the hot path).

    * W0 is split and re-stacked as [W0_obs; W0_lat] (matches the wrapper-side
      concat(obs, latent)) plus a separate tiny W0_act for the one-hot row-select.
    * Biases are reshaped to (1, U) and kept f32 (elementwise math stays f32).
    * The last layer is pre-transposed to (1, U); its bias becomes an SMEM scalar.
    * Weight matrices are cast to `weight_dtype` (use bf16 for num_units >= 256 on
      v6e/v7x: ~2x MXU throughput, half the resident-weight VMEM).
    """
    w0, b0 = params[0]
    w0_obs = w0[:obs_dim]
    w0_act = w0[obs_dim:obs_dim + action_dim]
    w0_lat = w0[obs_dim + action_dim:]
    flat = [
        jnp.concatenate([w0_obs, w0_lat], axis=0).astype(weight_dtype),  # (obs+lat, U)
        jnp.asarray(w0_act, jnp.float32),                                # (action, U)
        jnp.asarray(b0.reshape(1, -1), jnp.float32),                     # (1, U)
    ]
    for w, b in params[1:-1]:
        flat.append(jnp.asarray(w, weight_dtype))                        # (U, U)
        flat.append(jnp.asarray(b.reshape(1, -1), jnp.float32))          # (1, U)
    w_last, b_last = params[-1]
    flat.append(jnp.asarray(w_last.T, weight_dtype))                     # (1, U)
    flat.append(jnp.asarray(b_last.reshape(1), jnp.float32))             # (1,) -> SMEM
    return flat


def _vmem_limit_bytes(tb, ol_dim, vmem_params):
    """Explicit per-step VMEM budget: resident weights x 1 buffer (Buffered(1)) +
    double-buffered streaming blocks + headroom for the (TB, U) intermediate."""
    weight_bytes = sum(int(a.size) * a.dtype.itemsize for a in vmem_params)
    stream_bytes = 2 * (tb * ol_dim * 4 + tb * 4 + tb * 4)     # ol + act + out blocks
    num_units = max(int(a.shape[-1]) for a in vmem_params)
    headroom = 4 * tb * num_units * 4
    est = weight_bytes + stream_bytes + headroom
    # Clamp to [32 MiB, 64 MiB]: safe on v5e/v6e (128 MiB physical) and within v7x's
    # 64 MiB per-TC ceiling.
    return int(min(max(est, 32 * 1024 * 1024), 64 * 1024 * 1024))


def critic_forward(obs, action, latent, flat_params, *, num_hidden, block_b=512):
    """Forward pass. Batch is tiled at block_b (tb = min(block_b, B)); weights stay
    VMEM-resident (constant index_map, single-buffered); output is lane-dense (1, B)."""
    B = obs.shape[0]
    # Fused layer-0 slab: one (TB, obs+lat) operand -> one MXU push against the
    # stacked [W0_obs; W0_lat] weight (a single tiny extra HBM pass in the wrapper).
    ol = jnp.concatenate([obs, latent], axis=1)
    ol_dim = ol.shape[1]
    act = action.reshape(B, 1).astype(jnp.int32)

    tb = min(block_b, B)
    grid = pl.cdiv(B, tb)          # ragged last block: garbage rows are dropped on writeback

    vmem_params = flat_params[:-1]
    b_last = flat_params[-1]
    kernel = functools.partial(_critic_kernel, num_hidden)

    in_specs = [
        pl.BlockSpec((tb, ol_dim), lambda i: (i, 0)),
        pl.BlockSpec((tb, 1), lambda i: (i, 0)),
    ] + [
        # Constant blocks: single-buffer so the weight footprint isn't doubled.
        pl.BlockSpec(a.shape, lambda i: (0, 0), pipeline_mode=pl.Buffered(1))
        for a in vmem_params
    ] + [
        pl.BlockSpec(memory_space=pltpu.MemorySpace.SMEM),   # b_last scalar
    ]

    out = pl.pallas_call(
        kernel,
        out_shape=jax.ShapeDtypeStruct((1, B), jnp.float32),
        grid=(grid,),
        in_specs=in_specs,
        out_specs=pl.BlockSpec((1, tb), lambda i: (0, i)),
        compiler_params=pltpu.CompilerParams(
            dimension_semantics=("parallel",),
            vmem_limit_bytes=_vmem_limit_bytes(tb, ol_dim, vmem_params)),
    )(ol, act, *vmem_params, b_last)
    return out.reshape(B, 1)


def _ref_forward(obs, action, latent, params, action_dim):
    """Plain-JAX reference (inference-mode: dropout = identity)."""
    oh = jax.nn.one_hot(action, action_dim, dtype=obs.dtype)
    x = jnp.concatenate([obs, oh, latent], axis=1)
    n = len(params)
    for i, (w, b) in enumerate(params):
        x = jnp.dot(x, w, precision=jax.lax.Precision.HIGHEST) + b
        if i < n - 1:
            x = jnp.maximum(x, 0.0)
    return jax.nn.sigmoid(x)


if __name__ == "__main__":
    obs_dim, action_dim, latent_dim = 16, 4, 12
    num_hidden, num_units = 2, 32

    key = jax.random.PRNGKey(0)
    k_par, k_small, k_big, k_rag = jax.random.split(key, 4)
    params = init_critic_params(k_par, obs_dim, action_dim, latent_dim, num_hidden, num_units)
    flat_f32 = prepare_critic_params(params, obs_dim, action_dim, latent_dim)

    fwd = jax.jit(lambda o, a, l, p: critic_forward(o, a, l, p, num_hidden=num_hidden))
    fwd_t128 = jax.jit(lambda o, a, l, p: critic_forward(o, a, l, p,
                                                         num_hidden=num_hidden, block_b=128))

    def make_inputs(k, b):
        k1, k2, k3 = jax.random.split(k, 3)
        return (jax.random.normal(k1, (b, obs_dim), jnp.float32),
                jax.random.randint(k2, (b,), 0, action_dim, jnp.int32),
                jax.random.normal(k3, (b, latent_dim), jnp.float32))

    # --- Small batch (tb = B, grid = 1) ---
    obs1, act1, lat1 = make_inputs(k_small, 8)
    out1 = jax.block_until_ready(fwd(obs1, act1, lat1, flat_f32))
    ref1 = _ref_forward(obs1, act1, lat1, params, action_dim)
    assert out1.shape == (8, 1)
    assert bool(jnp.all((out1 > 0.0) & (out1 < 1.0)))
    assert bool(jnp.allclose(out1, ref1, atol=2e-3, rtol=2e-3)), "small-batch mismatch"

    # --- Large batch, multi-step grid (tb = 512, grid = 2), resident weights ---
    obs2, act2, lat2 = make_inputs(k_big, 1024)
    out2 = jax.block_until_ready(fwd(obs2, act2, lat2, flat_f32))
    ref2 = _ref_forward(obs2, act2, lat2, params, action_dim)
    assert out2.shape == (1024, 1)
    assert bool(jnp.allclose(out2, ref2, atol=2e-3, rtol=2e-3)), "large-batch mismatch"

    # --- Ragged batch, no wrapper-side padding (B=300, tb=128, grid=3) ---
    obs3, act3, lat3 = make_inputs(k_rag, 300)
    out3 = jax.block_until_ready(fwd_t128(obs3, act3, lat3, flat_f32))
    ref3 = _ref_forward(obs3, act3, lat3, params, action_dim)
    assert out3.shape == (300, 1)
    assert bool(jnp.allclose(out3, ref3, atol=2e-3, rtol=2e-3)), "ragged-batch mismatch"

    # --- bf16 weight storage path (the v6e/v7x recommendation for large num_units) ---
    flat_bf16 = prepare_critic_params(params, obs_dim, action_dim, latent_dim,
                                      weight_dtype=jnp.bfloat16)
    out4 = jax.block_until_ready(fwd(obs2, act2, lat2, flat_bf16))
    assert out4.shape == (1024, 1)
    assert bool(jnp.all(jnp.isfinite(out4)))
    assert bool(jnp.allclose(out4, ref2, atol=3e-2, rtol=3e-2)), "bf16 path mismatch"

    print("KERNEL_OK")
</pallas_src>

<mosaic_0001>
module attributes {stable_mosaic.version = 11 : i64} {
  func.func @_critic_kernel(%arg0: i32, %arg1: memref<8x28xf32, #tpu.memory_space<vmem>>, %arg2: memref<8x1xi32, #tpu.memory_space<vmem>>, %arg3: memref<28x32xf32, #tpu.memory_space<vmem>>, %arg4: memref<4x32xf32, #tpu.memory_space<vmem>>, %arg5: memref<1x32xf32, #tpu.memory_space<vmem>>, %arg6: memref<32x32xf32, #tpu.memory_space<vmem>>, %arg7: memref<1x32xf32, #tpu.memory_space<vmem>>, %arg8: memref<1x32xf32, #tpu.memory_space<vmem>>, %arg9: memref<1xf32, #tpu.memory_space<smem>>, %arg10: memref<1x8xf32, #tpu.memory_space<vmem>>) attributes {dimension_semantics = [#tpu.dimension_semantics<parallel>], iteration_bounds = array<i64: 1>, scalar_prefetch = 0 : i64, scratch_operands = 0 : i64, tpu.core_type = #tpu.core_type<tc>, window_params = [{transform_indices = @transform_0, window_bounds = array<i64: 8, 28>}, {transform_indices = @transform_1, window_bounds = array<i64: 8, 1>}, {pipeline_mode = #tpu.pipeline_mode<synchronous>, transform_indices = @transform_2, window_bounds = array<i64: 28, 32>}, {pipeline_mode = #tpu.pipeline_mode<synchronous>, transform_indices = @transform_3, window_bounds = array<i64: 4, 32>}, {pipeline_mode = #tpu.pipeline_mode<synchronous>, transform_indices = @transform_4, window_bounds = array<i64: 1, 32>}, {pipeline_mode = #tpu.pipeline_mode<synchronous>, transform_indices = @transform_5, window_bounds = array<i64: 32, 32>}, {pipeline_mode = #tpu.pipeline_mode<synchronous>, transform_indices = @transform_6, window_bounds = array<i64: 1, 32>}, {pipeline_mode = #tpu.pipeline_mode<synchronous>, transform_indices = @transform_7, window_bounds = array<i64: 1, 32>}, {transform_indices = @transform_8, window_bounds = array<i64: 1>}, {transform_indices = @transform_9, window_bounds = array<i64: 1, 8>}]} {
    %c0 = arith.constant 0 : index
    %c0_0 = arith.constant 0 : index
    %0 = vector.load %arg1[%c0, %c0_0] : memref<8x28xf32, #tpu.memory_space<vmem>>, vector<8x28xf32>
    %c0_1 = arith.constant 0 : index
    %c0_2 = arith.constant 0 : index
    %1 = vector.load %arg2[%c0_1, %c0_2] : memref<8x1xi32, #tpu.memory_space<vmem>>, vector<8x1xi32>
    %c0_3 = arith.constant 0 : index
    %c0_4 = arith.constant 0 : index
    %2 = vector.load %arg3[%c0_3, %c0_4] : memref<28x32xf32, #tpu.memory_space<vmem>>, vector<28x32xf32>
    %cst = arith.constant dense<0.000000e+00> : vector<8x32xf32>
    %3 = tpu.matmul %0, %2, %cst {dimension_numbers = #tpu.dot_dimension_numbers<[1], [0], [0], [1], [0, 0, 1, 1], [], []>} : vector<8x28xf32>, vector<28x32xf32>, vector<8x32xf32> -> vector<8x32xf32>
    %c0_5 = arith.constant 0 : index
    %c0_6 = arith.constant 0 : index
    %4 = vector.load %arg4[%c0_5, %c0_6] : memref<4x32xf32, #tpu.memory_space<vmem>>, vector<4x32xf32>
    %c0_i32 = arith.constant 0 : i32
    %5 = vector.broadcast %c0_i32 : i32 to vector<8x1xi32>
    %6 = arith.cmpi eq, %1, %5 : vector<8x1xi32>
    %cst_7 = arith.constant 1.000000e+00 : f32
    %cst_8 = arith.constant 0.000000e+00 : f32
    %7 = vector.broadcast %cst_7 : f32 to vector<8x1xf32>
    %8 = vector.broadcast %cst_8 : f32 to vector<8x1xf32>
    %9 = arith.select %6, %7, %8 : vector<8x1xi1>, vector<8x1xf32>
    %10 = vector.extract_strided_slice %4 {offsets = [0, 0], sizes = [1, 32], strides = [1, 1]} : vector<4x32xf32> to vector<1x32xf32>
    %11 = vector.broadcast %9 : vector<8x1xf32> to vector<8x32xf32>
    %12 = vector.broadcast %10 : vector<1x32xf32> to vector<8x32xf32>
    %13 = arith.mulf %11, %12 : vector<8x32xf32>
    %14 = arith.addf %3, %13 : vector<8x32xf32>
    %c1_i32 = arith.constant 1 : i32
    %15 = vector.broadcast %c1_i32 : i32 to vector<8x1xi32>
    %16 = arith.cmpi eq, %1, %15 : vector<8x1xi32>
    %cst_9 = arith.constant 1.000000e+00 : f32
    %cst_10 = arith.constant 0.000000e+00 : f32
    %17 = vector.broadcast %cst_9 : f32 to vector<8x1xf32>
    %18 = vector.broadcast %cst_10 : f32 to vector<8x1xf32>
    %19 = arith.select %16, %17, %18 : vector<8x1xi1>, vector<8x1xf32>
    %20 = vector.extract_strided_slice %4 {offsets = [1, 0], sizes = [1, 32], strides = [1, 1]} : vector<4x32xf32> to vector<1x32xf32>
    %21 = vector.broadcast %19 : vector<8x1xf32> to vector<8x32xf32>
    %22 = vector.broadcast %20 : vector<1x32xf32> to vector<8x32xf32>
    %23 = arith.mulf %21, %22 : vector<8x32xf32>
    %24 = arith.addf %14, %23 : vector<8x32xf32>
    %c2_i32 = arith.constant 2 : i32
    %25 = vector.broadcast %c2_i32 : i32 to vector<8x1xi32>
    %26 = arith.cmpi eq, %1, %25 : vector<8x1xi32>
    %cst_11 = arith.constant 1.000000e+00 : f32
    %cst_12 = arith.constant 0.000000e+00 : f32
    %27 = vector.broadcast %cst_11 : f32 to vector<8x1xf32>
    %28 = vector.broadcast %cst_12 : f32 to vector<8x1xf32>
    %29 = arith.select %26, %27, %28 : vector<8x1xi1>, vector<8x1xf32>
    %30 = vector.extract_strided_slice %4 {offsets = [2, 0], sizes = [1, 32], strides = [1, 1]} : vector<4x32xf32> to vector<1x32xf32>
    %31 = vector.broadcast %29 : vector<8x1xf32> to vector<8x32xf32>
    %32 = vector.broadcast %30 : vector<1x32xf32> to vector<8x32xf32>
    %33 = arith.mulf %31, %32 : vector<8x32xf32>
    %34 = arith.addf %24, %33 : vector<8x32xf32>
    %c3_i32 = arith.constant 3 : i32
    %35 = vector.broadcast %c3_i32 : i32 to vector<8x1xi32>
    %36 = arith.cmpi eq, %1, %35 : vector<8x1xi32>
    %cst_13 = arith.constant 1.000000e+00 : f32
    %cst_14 = arith.constant 0.000000e+00 : f32
    %37 = vector.broadcast %cst_13 : f32 to vector<8x1xf32>
    %38 = vector.broadcast %cst_14 : f32 to vector<8x1xf32>
    %39 = arith.select %36, %37, %38 : vector<8x1xi1>, vector<8x1xf32>
    %40 = vector.extract_strided_slice %4 {offsets = [3, 0], sizes = [1, 32], strides = [1, 1]} : vector<4x32xf32> to vector<1x32xf32>
    %41 = vector.broadcast %39 : vector<8x1xf32> to vector<8x32xf32>
    %42 = vector.broadcast %40 : vector<1x32xf32> to vector<8x32xf32>
    %43 = arith.mulf %41, %42 : vector<8x32xf32>
    %44 = arith.addf %34, %43 : vector<8x32xf32>
    %c0_15 = arith.constant 0 : index
    %c0_16 = arith.constant 0 : index
    %45 = vector.load %arg5[%c0_15, %c0_16] : memref<1x32xf32, #tpu.memory_space<vmem>>, vector<1x32xf32>
    %46 = vector.broadcast %45 : vector<1x32xf32> to vector<8x32xf32>
    %47 = arith.addf %44, %46 : vector<8x32xf32>
    %cst_17 = arith.constant 0.000000e+00 : f32
    %48 = vector.broadcast %cst_17 : f32 to vector<8x32xf32>
    %49 = arith.maximumf %47, %48 : vector<8x32xf32>
    %c0_18 = arith.constant 0 : index
    %c0_19 = arith.constant 0 : index
    %50 = vector.load %arg6[%c0_18, %c0_19] : memref<32x32xf32, #tpu.memory_space<vmem>>, vector<32x32xf32>
    %c0_20 = arith.constant 0 : index
    %c0_21 = arith.constant 0 : index
    %51 = vector.load %arg7[%c0_20, %c0_21] : memref<1x32xf32, #tpu.memory_space<vmem>>, vector<1x32xf32>
    %cst_22 = arith.constant dense<0.000000e+00> : vector<8x32xf32>
    %52 = tpu.matmul %49, %50, %cst_22 {dimension_numbers = #tpu.dot_dimension_numbers<[1], [0], [0], [1], [0, 0, 1, 1], [], []>} : vector<8x32xf32>, vector<32x32xf32>, vector<8x32xf32> -> vector<8x32xf32>
    %53 = vector.broadcast %51 : vector<1x32xf32> to vector<8x32xf32>
    %54 = arith.addf %52, %53 : vector<8x32xf32>
    %cst_23 = arith.constant 0.000000e+00 : f32
    %55 = vector.broadcast %cst_23 : f32 to vector<8x32xf32>
    %56 = arith.maximumf %54, %55 : vector<8x32xf32>
    %c0_24 = arith.constant 0 : index
    %c0_25 = arith.constant 0 : index
    %57 = vector.load %arg8[%c0_24, %c0_25] : memref<1x32xf32, #tpu.memory_space<vmem>>, vector<1x32xf32>
    %cst_26 = arith.constant dense<0.000000e+00> : vector<1x8xf32>
    %58 = tpu.matmul %57, %56, %cst_26 {dimension_numbers = #tpu.dot_dimension_numbers<[1], [1], [0], [0], [0, 0, 1, 0], [], []>} : vector<1x32xf32>, vector<8x32xf32>, vector<1x8xf32> -> vector<1x8xf32>
    %c0_27 = arith.constant 0 : index
    %59 = memref.load %arg9[%c0_27] : memref<1xf32, #tpu.memory_space<smem>>
    %60 = vector.broadcast %59 : f32 to vector<1x8xf32>
    %61 = arith.addf %58, %60 : vector<1x8xf32>
    %62 = arith.negf %61 : vector<1x8xf32>
    %63 = math.exp %62 : vector<1x8xf32>
    %cst_28 = arith.constant 1.000000e+00 : f32
    %64 = vector.broadcast %cst_28 : f32 to vector<1x8xf32>
    %65 = arith.addf %64, %63 : vector<1x8xf32>
    %66 = arith.divf %64, %65 : vector<1x8xf32>
    %c0_29 = arith.constant 0 : index
    %c0_30 = arith.constant 0 : index
    %67 = vector.load %arg10[%c0_29, %c0_30] : memref<1x8xf32, #tpu.memory_space<vmem>>, vector<1x8xf32>
    tpu.vector_store %arg10[%c0_29, %c0_30], %66 {strides = array<i32>} : memref<1x8xf32, #tpu.memory_space<vmem>>, vector<1x8xf32>,
    return
  }
  func.func @transform_0(%arg0: i32) -> (i32, i32) {
    %c0_i32 = arith.constant 0 : i32
    %c0_i32_0 = arith.constant 0 : i32
    return %arg0, %c0_i32 : i32, i32
  }
  func.func @transform_1(%arg0: i32) -> (i32, i32) {
    %c0_i32 = arith.constant 0 : i32
    %c0_i32_0 = arith.constant 0 : i32
    return %arg0, %c0_i32 : i32, i32
  }
  func.func @transform_2(%arg0: i32) -> (i32, i32) {
    %c0_i32 = arith.constant 0 : i32
    %c0_i32_0 = arith.constant 0 : i32
    %c0_i32_1 = arith.constant 0 : i32
    return %c0_i32, %c0_i32_0 : i32, i32
  }
  func.func @transform_3(%arg0: i32) -> (i32, i32) {
    %c0_i32 = arith.constant 0 : i32
    %c0_i32_0 = arith.constant 0 : i32
    %c0_i32_1 = arith.constant 0 : i32
    return %c0_i32, %c0_i32_0 : i32, i32
  }
  func.func @transform_4(%arg0: i32) -> (i32, i32) {
    %c0_i32 = arith.constant 0 : i32
    %c0_i32_0 = arith.constant 0 : i32
    %c0_i32_1 = arith.constant 0 : i32
    return %c0_i32, %c0_i32_0 : i32, i32
  }
  func.func @transform_5(%arg0: i32) -> (i32, i32) {
    %c0_i32 = arith.constant 0 : i32
    %c0_i32_0 = arith.constant 0 : i32
    %c0_i32_1 = arith.constant 0 : i32
    return %c0_i32, %c0_i32_0 : i32, i32
  }
  func.func @transform_6(%arg0: i32) -> (i32, i32) {
    %c0_i32 = arith.constant 0 : i32
    %c0_i32_0 = arith.constant 0 : i32
    %c0_i32_1 = arith.constant 0 : i32
    return %c0_i32, %c0_i32_0 : i32, i32
  }
  func.func @transform_7(%arg0: i32) -> (i32, i32) {
    %c0_i32 = arith.constant 0 : i32
    %c0_i32_0 = arith.constant 0 : i32
    %c0_i32_1 = arith.constant 0 : i32
    return %c0_i32, %c0_i32_0 : i32, i32
  }
  func.func @transform_8(%arg0: i32) -> i32 {
    %c0_i32 = arith.constant 0 : i32
    %c0_i32_0 = arith.constant 0 : i32
    return %c0_i32 : i32
  }
  func.func @transform_9(%arg0: i32) -> (i32, i32) {
    %c0_i32 = arith.constant 0 : i32
    %c0_i32_0 = arith.constant 0 : i32
    return %c0_i32, %arg0 : i32, i32
  }
}

</mosaic_0001>

<llo_original>
// kernel: _lambda_.1
$region0: #{_lambda_.1}
  #allocation0 [shape = 'u32[]', space=smem, size = 0x4, offset = 0x4, fixed_abs, tag = 'smem constant byte address 0x4 - core index']
  #allocation1 [shape = 'u32[144,128]{1,0:T(1,128)}', space=vmem, size = 0x12000, scoped, tag = 'internal scratch']
  #allocation2 [shape = 'f32[1]{0:T(128)S(6)}', space=smem, size = 0x200, scoped, tag = 'scoped memory for _lambda_.1']
  %s0 = inlined_call_operand.vmem [shape: f32[8,28], index: 0, kind: input, shape index: {}]
  %s1 = inlined_call_operand.vmem [shape: s32[8,1], index: 1, kind: input, shape index: {}]
  %s2 = inlined_call_operand.vmem [shape: f32[28,32], index: 2, kind: input, shape index: {}]
  %s3 = inlined_call_operand.vmem [shape: f32[4,32], index: 3, kind: input, shape index: {}]
  %s4 = inlined_call_operand.vmem [shape: f32[1,32], index: 4, kind: input, shape index: {}]
  %s5 = inlined_call_operand.hbm [shape: f32[32,32], index: 5, kind: input, shape index: {}]
  %s6 = inlined_call_operand.vmem [shape: f32[1,32], index: 6, kind: input, shape index: {}]
  %s7 = inlined_call_operand.vmem [shape: f32[1,32], index: 7, kind: input, shape index: {}]
  %s8 = inlined_call_operand.<no memory space> [shape: f32[1], index: 8, kind: input, shape index: {}]
  %s9 = inlined_call_operand.hbm [shape: f32[1,8], index: 9, kind: output, shape index: {}]
  %s10 = sld [smem:[#allocation0]]
  $region50: #{_lambda_.1} parent=0
    _
  %s12 = ssub.s32 1, %s10
  %s13 = scalar_select 0, %s12, %s10
  %14 = sst [smem:[#allocation2]] %s8
  $region1: #{_lambda_.1} parent=0
    #allocation3 [shape = 'u8[16384]{0}', space=vmem, size = 0x4000, scoped, tag = 'input window, operand 5, single buffered']
    #allocation4 [shape = 's32[1]{0}', space=sflag, size = 0x4, scoped, tag = 'scoped memory for _lambda_.1']
    #allocation5 [shape = 's32[1]{0}', space=sflag, size = 0x4, scoped, tag = 'scoped memory for _lambda_.1']
    #allocation6 [shape = 'u8[512]{0}', space=vmem, size = 0x400, scoped, tag = 'output window, operand 0, single buffered']
    %15 = vsyncpa [#allocation4], 0
    %16 = vsyncpa [#allocation5], 0
    // Predicated region
    $region2: #{_lambda_.1} parent=1 // pred_check
      _
    $region3: #{_lambda_.1} parent=1 // pred_check_branch
      %18 = sbr.rel (0) target = $region5
    $region4: #{_lambda_.1} parent=1 // pred_region
      _
    $region5: #{_lambda_.1} parent=1 // pred_fallthru
      _
    // Predicated region
    $region6: #{_lambda_.1} parent=1 // pred_check
      _
    $region7: #{_lambda_.1} parent=1 // pred_check_branch
      %20 = sbr.rel (0) target = $region9
    $region8: #{_lambda_.1} parent=1 // pred_region
      _
    $region9: #{_lambda_.1} parent=1 // pred_fallthru
      _
    // Predicated region
    $region10: #{_lambda_.1} parent=1 // pred_check
      _
    $region11: #{_lambda_.1} parent=1 // pred_check_branch
      %22 = sbr.rel (0) target = $region13
    $region12: #{_lambda_.1} parent=1 // pred_region
      _
    $region13: #{_lambda_.1} parent=1 // pred_fallthru
      _
    // Predicated region
    $region14: #{_lambda_.1} parent=1 // pred_check
      _
    $region15: #{_lambda_.1} parent=1 // pred_check_branch
      %24 = sbr.rel (0) target = $region17
    $region16: #{_lambda_.1} parent=1 // pred_region
      _
    $region17: #{_lambda_.1} parent=1 // pred_fallthru
      _
    // Predicated region
    $region18: #{_lambda_.1} parent=1 // pred_check
      _
    $region19: #{_lambda_.1} parent=1 // pred_check_branch
      %26 = sbr.rel (0) target = $region21
    $region20: #{_lambda_.1} parent=1 // pred_region
      _
    $region21: #{_lambda_.1} parent=1 // pred_fallthru
      _
    // Predicated region
    $region22: #{_lambda_.1} parent=1 // pred_check
      _
    $region23: #{_lambda_.1} parent=1 // pred_check_branch
      %28 = sbr.rel (0) target = $region25
    $region24: #{_lambda_.1} parent=1 // pred_region
      %s30 = ssub.s32 512, 512
      %31 = vsyncadd [#allocation4], %s30
      %s32 = sshll.u32 [#allocation3], 4
      %s33 = int_to_ptr.vmem [resolvable:$true] %s32
      %38 = dma.hbm_to_vmem [thread:$0]  %s5, 512, %s33, [#allocation4], 128, 128, 8
    $region25: #{_lambda_.1} parent=1 // pred_fallthru
      _
    // Predicated region
    $region26: #{_lambda_.1} parent=1 // pred_check
      _
    $region27: #{_lambda_.1} parent=1 // pred_check_branch
      %40 = sbr.rel (0) target = $region29
    $region28: #{_lambda_.1} parent=1 // pred_region
      _
    $region29: #{_lambda_.1} parent=1 // pred_fallthru
      _
    // Predicated region
    $region30: #{_lambda_.1} parent=1 // pred_check
      _
    $region31: #{_lambda_.1} parent=1 // pred_check_branch
      %42 = sbr.rel (0) target = $region33
    $region32: #{_lambda_.1} parent=1 // pred_region
      _
    $region33: #{_lambda_.1} parent=1 // pred_fallthru
      _
    // Predicated region
    $region34: #{_lambda_.1} parent=1 // pred_check
      _
    $region35: #{_lambda_.1} parent=1 // pred_check_branch
      %44 = sbr.rel (0) target = $region37
    $region36: #{_lambda_.1} parent=1 // pred_region
      _
    $region37: #{_lambda_.1} parent=1 // pred_fallthru
      _
    // Predicated region
    $region38: #{_lambda_.1} parent=1 // pred_check
      _
    $region39: #{_lambda_.1} parent=1 // pred_check_branch
      %46 = sbr.rel (0) target = $region41
    $region40: #{_lambda_.1} parent=1 // pred_region
      %47 = dma.done [#allocation4], 512
    $region41: #{_lambda_.1} parent=1 // pred_fallthru
      _
    %v48 = vld [vmem:[%s0] sm:$0xff]
    %v49 = vld [vmem:[%s1] sm:$0xff]
    %v50 = vld [vmem:[%s2] sm:$0xff]
    %v51 = vld [vmem:[%s2 + $0x8] sm:$0xff]
    %v52 = vld [vmem:[%s2 + $0x10] sm:$0xff]
    %v53 = vld [vmem:[%s2 + $0x18] sm:$0xf]
    %v54 = vld [vmem:[%s3] sm:$0xf]
    %vm55 = vcmp.eq.s32.totalorder %v49, 0
    %v56 = vsel %vm55, 1.0, 0.0
    %58 = vset.pattern.permute.xlu0 0
    %59 = vperm.xlu0 %58, %v56
    %v60 = vpop.permute.xlu0 %59
    %v62 = vlaneseq
    %v63 = vshrl.u32 %v62, 7
    %v64 = vsub.s32 0, %v63
    %v65 = vrot.slane %v54, %v64
    %v66 = vmul.f32 %v60, %v65
    %vm67 = vcmask 228352
    %v69 = vsel %vm67, %v48, 0
    %vm71 = vcmask 1043456
    %v73 = vsel %vm71, %v53, 0
    %75 = vmatprep.subr.mxu0 0.0
    %76 = vmatpush1.msra.mxu0 %v50
    %77 = vmatprep.subr.mxu0 0.0
    %78 = vmatpush1.msra.mxu0 %v51
    %79 = vmatprep.subr.mxu0 0.0
    %80 = vmatpush1.msra.mxu0 %v52
    %81 = vmatprep.subr.mxu0 0.0
    %82 = vmatpush1.msra.mxu0 %v73
    %83 = vmatprep.subr.mxu0 0.0
    %84 = vmatpush1.msra.mxu0 0.0
    %85 = vmatprep.subr.mxu0 0.0
    %86 = vmatpush1.msra.mxu0 0.0
    %87 = vmatprep.subr.mxu0 0.0
    %88 = vmatpush1.msra.mxu0 0.0
    %89 = vmatprep.subr.mxu0 0.0
    %90 = vmatpush1.msra.mxu0 0.0
    %91 = vmatprep.subr.mxu0 0.0
    %92 = vmatpush1.msra.mxu0 0.0
    %93 = vmatprep.subr.mxu0 0.0
    %94 = vmatpush1.msra.mxu0 0.0
    %95 = vmatprep.subr.mxu0 0.0
    %96 = vmatpush1.msra.mxu0 0.0
    %97 = vmatprep.subr.mxu0 0.0
    %98 = vmatpush1.msra.mxu0 0.0
    %99 = vmatprep.subr.mxu0 0.0
    %100 = vmatpush1.msra.mxu0 0.0
    %101 = vmatprep.subr.mxu0 0.0
    %102 = vmatpush1.msra.mxu0 0.0
    %103 = vmatprep.subr.mxu0 0.0
    %104 = vmatpush1.msra.mxu0 0.0
    %105 = vmatprep.subr.mxu0 0.0
    %106 = vmatpush1.msra.mxu0 0.0
    %107 = vmatprep.subr.mxu0 0.0
    %108 = vmatpush1.msra.mxu0 0.0
    %109 = vmatprep.subr.mxu0 0.0
    %110 = vmatpush1.msra.mxu0 0.0
    %111 = vmatprep.subr.mxu0 0.0
    %112 = vmatpush1.msra.mxu0 0.0
    %113 = vmatprep.subr.mxu0 0.0
    %114 = vmatpush1.msra.mxu0 0.0
    %115 = vmatprep.subr.mxu0 0.0
    %116 = vmatpush1.msra.mxu0 0.0
    %117 = vmatprep.subr.mxu0 0.0
    %118 = vmatpush1.msra.mxu0 0.0
    %119 = vmatprep.subr.mxu0 0.0
    %120 = vmatpush1.msra.mxu0 0.0
    %121 = vmatprep.subr.mxu0 0.0
    %122 = vmatpush1.msra.mxu0 0.0
    %123 = vmatprep.subr.mxu0 0.0
    %124 = vmatpush1.msra.mxu0 0.0
    %125 = vmatprep.subr.mxu0 0.0
    %126 = vmatpush1.msra.mxu0 0.0
    %127 = vmatprep.subr.mxu0 0.0
    %128 = vmatpush1.msra.mxu0 0.0
    %129 = vmatprep.subr.mxu0 0.0
    %130 = vmatpush1.msra.mxu0 0.0
    %131 = vmatprep.subr.mxu0 0.0
    %132 = vmatpush1.msra.mxu0 0.0
    %133 = vmatprep.subr.mxu0 0.0
    %134 = vmatpush1.msra.mxu0 0.0
    %135 = vmatprep.subr.mxu0 0.0
    %136 = vmatpush1.msra.mxu0 0.0
    %137 = vmatprep.subr.mxu0 0.0
    %138 = vmatpush1.msra.mxu0 0.0
    %139 = vmatprep.mubr.f32.mxu0 0.0
    %140 = vmatmul.mubr.f32.gmra.mrb[0].mxu0 %v69
    %v141 = vpop.f32.mrb[0].mxu0
    %v142 = vadd.f32 %v66, %v141
    %v143 = vpop.f32.mrb[0].mxu0
    %144 = vdwg.mxu0
    %vm145 = vcmp.eq.s32.totalorder %v49, 1
    %v146 = vsel %vm145, 1.0, 0.0
    %148 = vset.pattern.permute.xlu0 0
    %149 = vperm.xlu0 %148, %v146
    %v150 = vpop.permute.xlu0 %149
    %v152 = vlaneseq
    %v153 = vshrl.u32 %v152, 7
    %v154 = vsub.s32 1, %v153
    %v155 = vrot.slane %v54, %v154
    %v156 = vmul.f32 %v150, %v155
    %v157 = vadd.f32 %v142, %v156
    %vm158 = vcmp.eq.s32.totalorder %v49, 2
    %v159 = vsel %vm158, 1.0, 0.0
    %161 = vset.pattern.permute.xlu0 0
    %162 = vperm.xlu0 %161, %v159
    %v163 = vpop.permute.xlu0 %162
    %v165 = vlaneseq
    %v166 = vshrl.u32 %v165, 7
    %v167 = vsub.s32 2, %v166
    %v168 = vrot.slane %v54, %v167
    %v169 = vmul.f32 %v163, %v168
    %v170 = vadd.f32 %v157, %v169
    %vm171 = vcmp.eq.s32.totalorder %v49, 3
    %v172 = vsel %vm171, 1.0, 0.0
    %174 = vset.pattern.permute.xlu0 0
    %175 = vperm.xlu0 %174, %v172
    %v176 = vpop.permute.xlu0 %175
    %v178 = vlaneseq
    %v179 = vshrl.u32 %v178, 7
    %v180 = vsub.s32 3, %v179
    %v181 = vrot.slane %v54, %v180
    %v182 = vmul.f32 %v176, %v181
    %v183 = vadd.f32 %v170, %v182
    %v184 = vld [vmem:[%s4] sm:$0x1]
    %v186 = vlaneseq
    %v187 = vshrl.u32 %v186, 7
    %v188 = vsub.s32 0, %v187
    %v189 = vrot.slane %v184, %v188
    %v191 = vadd.f32 %v183, %v189
    %v192 = vmax.f32 %v191, 0.0
    %v193 = vld [vmem:[#allocation3] sm:$0xff]
    %v194 = vld [vmem:[#allocation3 + $0x8] sm:$0xff]
    %v195 = vld [vmem:[#allocation3 + $0x10] sm:$0xff]
    %v196 = vld [vmem:[#allocation3 + $0x18] sm:$0xff]
    %v197 = vld [vmem:[%s6] sm:$0x1]
    %v199 = vlaneseq
    %v200 = vshrl.u32 %v199, 7
    %v201 = vsub.s32 0, %v200
    %v202 = vrot.slane %v197, %v201
    %vm204 = vcmask 261120
    %v206 = vsel %vm204, %v192, 0
    %208 = vmatprep.subr.mxu0 0.0
    %209 = vmatpush1.msra.mxu0 %v193
    %210 = vmatprep.subr.mxu0 0.0
    %211 = vmatpush1.msra.mxu0 %v194
    %212 = vmatprep.subr.mxu0 0.0
    %213 = vmatpush1.msra.mxu0 %v195
    %214 = vmatprep.subr.mxu0 0.0
    %215 = vmatpush1.msra.mxu0 %v196
    %216 = vmatprep.subr.mxu0 0.0
    %217 = vmatpush1.msra.mxu0 0.0
    %218 = vmatprep.subr.mxu0 0.0
    %219 = vmatpush1.msra.mxu0 0.0
    %220 = vmatprep.subr.mxu0 0.0
    %221 = vmatpush1.msra.mxu0 0.0
    %222 = vmatprep.subr.mxu0 0.0
    %223 = vmatpush1.msra.mxu0 0.0
    %224 = vmatprep.subr.mxu0 0.0
    %225 = vmatpush1.msra.mxu0 0.0
    %226 = vmatprep.subr.mxu0 0.0
    %227 = vmatpush1.msra.mxu0 0.0
    %228 = vmatprep.subr.mxu0 0.0
    %229 = vmatpush1.msra.mxu0 0.0
    %230 = vmatprep.subr.mxu0 0.0
    %231 = vmatpush1.msra.mxu0 0.0
    %232 = vmatprep.subr.mxu0 0.0
    %233 = vmatpush1.msra.mxu0 0.0
    %234 = vmatprep.subr.mxu0 0.0
    %235 = vmatpush1.msra.mxu0 0.0
    %236 = vmatprep.subr.mxu0 0.0
    %237 = vmatpush1.msra.mxu0 0.0
    %238 = vmatprep.subr.mxu0 0.0
    %239 = vmatpush1.msra.mxu0 0.0
    %240 = vmatprep.subr.mxu0 0.0
    %241 = vmatpush1.msra.mxu0 0.0
    %242 = vmatprep.subr.mxu0 0.0
    %243 = vmatpush1.msra.mxu0 0.0
    %244 = vmatprep.subr.mxu0 0.0
    %245 = vmatpush1.msra.mxu0 0.0
    %246 = vmatprep.subr.mxu0 0.0
    %247 = vmatpush1.msra.mxu0 0.0
    %248 = vmatprep.subr.mxu0 0.0
    %249 = vmatpush1.msra.mxu0 0.0
    %250 = vmatprep.subr.mxu0 0.0
    %251 = vmatpush1.msra.mxu0 0.0
    %252 = vmatprep.subr.mxu0 0.0
    %253 = vmatpush1.msra.mxu0 0.0
    %254 = vmatprep.subr.mxu0 0.0
    %255 = vmatpush1.msra.mxu0 0.0
    %256 = vmatprep.subr.mxu0 0.0
    %257 = vmatpush1.msra.mxu0 0.0
    %258 = vmatprep.subr.mxu0 0.0
    %259 = vmatpush1.msra.mxu0 0.0
    %260 = vmatprep.subr.mxu0 0.0
    %261 = vmatpush1.msra.mxu0 0.0
    %262 = vmatprep.subr.mxu0 0.0
    %263 = vmatpush1.msra.mxu0 0.0
    %264 = vmatprep.subr.mxu0 0.0
    %265 = vmatpush1.msra.mxu0 0.0
    %266 = vmatprep.subr.mxu0 0.0
    %267 = vmatpush1.msra.mxu0 0.0
    %268 = vmatprep.subr.mxu0 0.0
    %269 = vmatpush1.msra.mxu0 0.0
    %270 = vmatprep.subr.mxu0 0.0
    %271 = vmatpush1.msra.mxu0 0.0
    %272 = vmatprep.mubr.f32.mxu0 0.0
    %273 = vmatmul.mubr.f32.gmra.mrb[0].mxu0 %v206
    %v274 = vpop.f32.mrb[0].mxu0
    %v275 = vadd.f32 %v202, %v274
    %v276 = vpop.f32.mrb[0].mxu0
    %277 = vdwg.mxu0
    %v278 = vmax.f32 %v275, 0.0
    %v279 = vld [vmem:[%s7] sm:$0x1]
    %s280 = sld [smem:[#allocation2]]
    %v281 = vstv %s280
    %v283 = vsel %vm204, %v279, 0
    %v286 = vsel %vm204, %v278, 0
    %288 = vmatprep.subr.mxu0 0.0
    %289 = vmatpush1.xpose.msra.mxu0 %v286
    %290 = vmatprep.subr.mxu0 0.0
    %291 = vmatpush1.xpose.msra.mxu0 0.0
    %292 = vmatprep.subr.mxu0 0.0
    %293 = vmatpush1.xpose.msra.mxu0 0.0
    %294 = vmatprep.subr.mxu0 0.0
    %295 = vmatpush1.xpose.msra.mxu0 0.0
    %296 = vmatprep.subr.mxu0 0.0
    %297 = vmatpush1.xpose.msra.mxu0 0.0
    %298 = vmatprep.subr.mxu0 0.0
    %299 = vmatpush1.xpose.msra.mxu0 0.0
    %300 = vmatprep.subr.mxu0 0.0
    %301 = vmatpush1.xpose.msra.mxu0 0.0
    %302 = vmatprep.subr.mxu0 0.0
    %303 = vmatpush1.xpose.msra.mxu0 0.0
    %304 = vmatprep.subr.mxu0 0.0
    %305 = vmatpush1.xpose.msra.mxu0 0.0
    %306 = vmatprep.subr.mxu0 0.0
    %307 = vmatpush1.xpose.msra.mxu0 0.0
    %308 = vmatprep.subr.mxu0 0.0
    %309 = vmatpush1.xpose.msra.mxu0 0.0
    %310 = vmatprep.subr.mxu0 0.0
    %311 = vmatpush1.xpose.msra.mxu0 0.0
    %312 = vmatprep.subr.mxu0 0.0
    %313 = vmatpush1.xpose.msra.mxu0 0.0
    %314 = vmatprep.subr.mxu0 0.0
    %315 = vmatpush1.xpose.msra.mxu0 0.0
    %316 = vmatprep.subr.mxu0 0.0
    %317 = vmatpush1.xpose.msra.mxu0 0.0
    %318 = vmatprep.subr.mxu0 0.0
    %319 = vmatpush1.xpose.msra.mxu0 0.0
    %320 = vmatprep.subr.mxu0 0.0
    %321 = vmatpush1.xpose.msra.mxu0 0.0
    %322 = vmatprep.subr.mxu0 0.0
    %323 = vmatpush1.xpose.msra.mxu0 0.0
    %324 = vmatprep.subr.mxu0 0.0
    %325 = vmatpush1.xpose.msra.mxu0 0.0
    %326 = vmatprep.subr.mxu0 0.0
    %327 = vmatpush1.xpose.msra.mxu0 0.0
    %328 = vmatprep.subr.mxu0 0.0
    %329 = vmatpush1.xpose.msra.mxu0 0.0
    %330 = vmatprep.subr.mxu0 0.0
    %331 = vmatpush1.xpose.msra.mxu0 0.0
    %332 = vmatprep.subr.mxu0 0.0
    %333 = vmatpush1.xpose.msra.mxu0 0.0
    %334 = vmatprep.subr.mxu0 0.0
    %335 = vmatpush1.xpose.msra.mxu0 0.0
    %336 = vmatprep.subr.mxu0 0.0
    %337 = vmatpush1.xpose.msra.mxu0 0.0
    %338 = vmatprep.subr.mxu0 0.0
    %339 = vmatpush1.xpose.msra.mxu0 0.0
    %340 = vmatprep.subr.mxu0 0.0
    %341 = vmatpush1.xpose.msra.mxu0 0.0
    %342 = vmatprep.subr.mxu0 0.0
    %343 = vmatpush1.xpose.msra.mxu0 0.0
    %344 = vmatprep.subr.mxu0 0.0
    %345 = vmatpush1.xpose.msra.mxu0 0.0
    %346 = vmatprep.subr.mxu0 0.0
    %347 = vmatpush1.xpose.msra.mxu0 0.0
    %348 = vmatprep.subr.mxu0 0.0
    %349 = vmatpush1.xpose.msra.mxu0 0.0
    %350 = vmatprep.subr.mxu0 0.0
    %351 = vmatpush1.xpose.msra.mxu0 0.0
    %352 = vmatprep.mubr.f32.mxu0 0.0
    %353 = vmatmul.mubr.f32.gmra.mrb[0].mxu0 %v283
    %v354 = vpop.f32.mrb[0].mxu0
    %v355 = vadd.f32 %v281, %v354
    %v356 = vpop.f32.mrb[0].mxu0
    %357 = vdwg.mxu0
    %v358 = vxor.u32 %v355, 2147483648
    %v359 = vmul.f32 %v358, 1.442695
    %v360 = vpow.pop %v359
    %v361 = vadd.f32 %v360, 1.0
    %v362 = vrcp.pop %v361
    %v363 = vmul.f32 1.0, %v362
    %vm364 = vcmask 57344
    %365 = vst.msk [vmem:[#allocation6] sm:$0x1] %vm364, %v363
    // Predicated region
    $region42: #{_lambda_.1} parent=1 // pred_check
      _
    $region43: #{_lambda_.1} parent=1 // pred_check_branch
      %367 = sbr.rel (0) target = $region45
    $region44: #{_lambda_.1} parent=1 // pred_region
      %s369 = ssub.s32 16, 16
      %370 = vsyncadd [#allocation5], %s369
      %s372 = sshll.u32 [#allocation6], 4
      %s373 = int_to_ptr.vmem [resolvable:$true] %s372
      %375 = dma.vmem_to_hbm [thread:$0]  %s373, 16, %s9, [#allocation5]
    $region45: #{_lambda_.1} parent=1 // pred_fallthru
      _
    // Predicated region
    $region46: #{_lambda_.1} parent=1 // pred_check
      _
    $region47: #{_lambda_.1} parent=1 // pred_check_branch
      %377 = sbr.rel (0) target = $region49
    $region48: #{_lambda_.1} parent=1 // pred_region
      %378 = dma.done [#allocation5], 16
    $region49: #{_lambda_.1} parent=1 // pred_fallthru
      _
    %379 = vsyncpa [#allocation4], 1
    %380 = vsyncpa [#allocation5], 1

</llo_original>
